<compile_context>
chip_gen: v7x
topology: tpu7x:2x2x1
jax: 0.10.0
libtpu: 0.0.40
codegen_flags: <defaults>
</compile_context>

<pallas_src>
import jax
import jax.numpy as jnp
from jax.experimental import pallas as pl
from jax.experimental.pallas import tpu as pltpu

IN_FEATURES = 300
OUT_FEATURES = 4
N_PAD = 128            # sublane/lane padding for the resident weight only
SINGLE_TILE_MAX = 512  # below this, use the no-grid whole-array path
MAX_BATCH_TILE = 4096  # rows per grid step cap (VMEM-safe on v5e/v6e/v7x)


def linear_kernel(x_ref, w_ref, b_ref, o_ref):
    # x_ref: [TB, K]  w_ref: [N_PAD, K]  b_ref: [1, OUT]  o_ref: [TB, OUT]
    acc = jax.lax.dot_general(
        x_ref[...], w_ref[...],
        dimension_numbers=(((1,), (1,)), ((), ())),   # contract K with K: x @ w.T
        preferred_element_type=jnp.float32)           # f32 accumulation on MXU
    # Only the first OUT_FEATURES columns are real; add bias in f32 and store
    # the narrow (TB, 4) result directly (masked stores here are negligible).
    o_ref[...] = (acc[:, :OUT_FEATURES] + b_ref[...]).astype(o_ref.dtype)


def prepare_params(weight, bias, n_pad=N_PAD):
    """One-time layout prep (hoisted out of the per-call hot path).

    weight: [OUT, IN] as stored by nn.Linear; bias: [OUT].
    Returns zero-padded weight [n_pad, IN] and bias as [1, OUT].
    """
    n, k = weight.shape
    w_pad = jnp.zeros((n_pad, k), weight.dtype).at[:n, :].set(weight)
    b2d = bias.reshape(1, n)
    return w_pad, b2d


def _round_up(x, m):
    return ((x + m - 1) // m) * m


def _choose_batch_tile(B, max_tile=MAX_BATCH_TILE):
    # At least 2 grid steps (so v7x's two TensorCores both get work),
    # tiles a multiple of 8 sublanes, capped for VMEM.
    tile = _round_up(pl.cdiv(B, 2), 8)
    return max(8, min(max_tile, tile))


def linear_forward(x, w_pad, b2d):
    """x: [B, 300] -> logits [B, 4] (matches nn.Linear(300, 4))."""
    B, K = x.shape
    NP = w_pad.shape[0]
    OUT = b2d.shape[1]

    if B <= SINGLE_TILE_MAX:
        # Small-batch path: whole arrays resident in VMEM, no grid/pipeline
        # machinery -- at these sizes the kernel is pure fixed overhead.
        return pl.pallas_call(
            linear_kernel,
            out_shape=jax.ShapeDtypeStruct((B, OUT), x.dtype),
            in_specs=[
                pl.BlockSpec(memory_space=pltpu.MemorySpace.VMEM),
                pl.BlockSpec(memory_space=pltpu.MemorySpace.VMEM),
                pl.BlockSpec(memory_space=pltpu.MemorySpace.VMEM),
            ],
            out_specs=pl.BlockSpec(memory_space=pltpu.MemorySpace.VMEM),
        )(x, w_pad, b2d)

    # Batch-tiled path: x streamed in (TB, K) tiles, weight/bias resident
    # (constant block index -> no per-step re-DMA), batch axis "parallel"
    # so it shards across TensorCores on v7x.
    tile = _choose_batch_tile(B)
    return pl.pallas_call(
        linear_kernel,
        out_shape=jax.ShapeDtypeStruct((B, OUT), x.dtype),
        grid=(pl.cdiv(B, tile),),
        in_specs=[
            pl.BlockSpec((tile, K), lambda i: (i, 0)),
            pl.BlockSpec((NP, K), lambda i: (0, 0)),
            pl.BlockSpec((1, OUT), lambda i: (0, 0)),
        ],
        out_specs=pl.BlockSpec((tile, OUT), lambda i: (i, 0)),
        compiler_params=pltpu.CompilerParams(
            dimension_semantics=("parallel",)),
    )(x, w_pad, b2d)


if __name__ == "__main__":
    key = jax.random.PRNGKey(0)
    k_x, k_w, k_b, k_x2 = jax.random.split(key, 4)

    B, IN, OUT = 8, IN_FEATURES, OUT_FEATURES

    # Deterministic parameter init (xavier_normal_ for weight, like the module).
    xavier_std = (2.0 / (IN + OUT)) ** 0.5
    weight = jax.random.normal(k_w, (OUT, IN), dtype=jnp.float32) * xavier_std
    # nn.Linear default bias init: uniform(-1/sqrt(IN), 1/sqrt(IN))
    bound = 1.0 / (IN ** 0.5)
    bias = jax.random.uniform(k_b, (OUT,), dtype=jnp.float32,
                              minval=-bound, maxval=bound)

    # One-time layout prep of params (outside the per-call path).
    w_pad, b2d = prepare_params(weight, bias)

    # Small-batch path (module-consistent small shape).
    x = jax.random.normal(k_x, (B, IN), dtype=jnp.float32)
    logits = linear_forward(x, w_pad, b2d)
    jax.block_until_ready(logits)
    ref = x @ weight.T + bias
    assert logits.shape == (B, OUT)
    assert jnp.allclose(logits, ref, atol=1e-5, rtol=1e-5)

    # Also exercise the batch-tiled grid path (incl. a masked tail tile).
    B2 = 1032
    x2 = jax.random.normal(k_x2, (B2, IN), dtype=jnp.float32)
    logits2 = linear_forward(x2, w_pad, b2d)
    jax.block_until_ready(logits2)
    ref2 = x2 @ weight.T + bias
    assert logits2.shape == (B2, OUT)
    assert jnp.allclose(logits2, ref2, atol=1e-5, rtol=1e-5)

    print("KERNEL_OK")
</pallas_src>

<mosaic_0001>
module attributes {stable_mosaic.version = 11 : i64} {
  func.func @linear_kernel(%arg0: memref<8x300xf32, #tpu.memory_space<vmem>>, %arg1: memref<128x300xf32, #tpu.memory_space<vmem>>, %arg2: memref<1x4xf32, #tpu.memory_space<vmem>>, %arg3: memref<8x4xf32, #tpu.memory_space<vmem>>) attributes {dimension_semantics = [], scalar_prefetch = 0 : i64, scratch_operands = 0 : i64, tpu.core_type = #tpu.core_type<tc>} {
    %c0 = arith.constant 0 : index
    %c0_0 = arith.constant 0 : index
    %0 = vector.load %arg0[%c0, %c0_0] : memref<8x300xf32, #tpu.memory_space<vmem>>, vector<8x300xf32>
    %c0_1 = arith.constant 0 : index
    %c0_2 = arith.constant 0 : index
    %1 = vector.load %arg1[%c0_1, %c0_2] : memref<128x300xf32, #tpu.memory_space<vmem>>, vector<128x300xf32>
    %cst = arith.constant dense<0.000000e+00> : vector<8x128xf32>
    %2 = tpu.matmul %0, %1, %cst {dimension_numbers = #tpu.dot_dimension_numbers<[1], [1], [0], [0], [0, 0, 1, 0], [], []>} : vector<8x300xf32>, vector<128x300xf32>, vector<8x128xf32> -> vector<8x128xf32>
    %3 = vector.extract_strided_slice %2 {offsets = [0, 0], sizes = [8, 4], strides = [1, 1]} : vector<8x128xf32> to vector<8x4xf32>
    %c0_3 = arith.constant 0 : index
    %c0_4 = arith.constant 0 : index
    %4 = vector.load %arg2[%c0_3, %c0_4] : memref<1x4xf32, #tpu.memory_space<vmem>>, vector<1x4xf32>
    %5 = vector.broadcast %4 : vector<1x4xf32> to vector<8x4xf32>
    %6 = arith.addf %3, %5 : vector<8x4xf32>
    %c0_5 = arith.constant 0 : index
    %c0_6 = arith.constant 0 : index
    %7 = vector.load %arg3[%c0_5, %c0_6] : memref<8x4xf32, #tpu.memory_space<vmem>>, vector<8x4xf32>
    tpu.vector_store %arg3[%c0_5, %c0_6], %6 {strides = array<i32>} : memref<8x4xf32, #tpu.memory_space<vmem>>, vector<8x4xf32>,
    return
  }
}

</mosaic_0001>

<llo_original>
// kernel: tpu_custom_call.1
$region0: #{tpu_custom_call.1}
  #allocation0 [shape = 'u32[]', space=smem, size = 0x4, offset = 0x4, fixed_abs, tag = 'smem constant byte address 0x4 - core index']
  #allocation1 [shape = 'u32[144,128]{1,0:T(1,128)}', space=vmem, size = 0x12000, scoped, tag = 'internal scratch']
  %s0 = inlined_call_operand.vmem [shape: f32[8,300], index: 0, kind: input, shape index: {}]
  %s1 = inlined_call_operand.vmem [shape: f32[128,300], index: 1, kind: input, shape index: {}]
  %s2 = inlined_call_operand.vmem [shape: f32[1,4], index: 2, kind: input, shape index: {}]
  %s3 = inlined_call_operand.vmem [shape: f32[8,4], index: 3, kind: output, shape index: {}]
  %s4 = sld [smem:[#allocation0]]
  $region22: #{tpu_custom_call.1} parent=0
    _
  %s6 = ssub.s32 1, %s4
  %s7 = scalar_select 0, %s6, %s4
  // Predicated region
  $region2: #{tpu_custom_call.1} parent=0 // pred_check
    _
  $region3: #{tpu_custom_call.1} parent=0 // pred_check_branch
    %9 = sbr.rel (0) target = $region5
  $region4: #{tpu_custom_call.1} parent=0 // pred_region
    _
  $region5: #{tpu_custom_call.1} parent=0 // pred_fallthru
    _
  // Predicated region
  $region6: #{tpu_custom_call.1} parent=0 // pred_check
    _
  $region7: #{tpu_custom_call.1} parent=0 // pred_check_branch
    %11 = sbr.rel (0) target = $region9
  $region8: #{tpu_custom_call.1} parent=0 // pred_region
    _
  $region9: #{tpu_custom_call.1} parent=0 // pred_fallthru
    _
  // Predicated region
  $region10: #{tpu_custom_call.1} parent=0 // pred_check
    _
  $region11: #{tpu_custom_call.1} parent=0 // pred_check_branch
    %13 = sbr.rel (0) target = $region13
  $region12: #{tpu_custom_call.1} parent=0 // pred_region
    _
  $region13: #{tpu_custom_call.1} parent=0 // pred_fallthru
    _
  %v14 = vld [vmem:[%s0] sm:$0xff]
  %v15 = vld [vmem:[%s0 + $0x8] sm:$0xff]
  %v16 = vld [vmem:[%s0 + $0x10] sm:$0xff]
  %v17 = vld [vmem:[%s1] sm:$0xff]
  %v18 = vld [vmem:[%s1 + $0x8] sm:$0xff]
  %v19 = vld [vmem:[%s1 + $0x10] sm:$0xff]
  %v20 = vld [vmem:[%s1 + $0x18] sm:$0xff]
  %v21 = vld [vmem:[%s1 + $0x20] sm:$0xff]
  %v22 = vld [vmem:[%s1 + $0x28] sm:$0xff]
  %v23 = vld [vmem:[%s1 + $0x30] sm:$0xff]
  %v24 = vld [vmem:[%s1 + $0x38] sm:$0xff]
  %v25 = vld [vmem:[%s1 + $0x40] sm:$0xff]
  %v26 = vld [vmem:[%s1 + $0x48] sm:$0xff]
  %v27 = vld [vmem:[%s1 + $0x50] sm:$0xff]
  %v28 = vld [vmem:[%s1 + $0x58] sm:$0xff]
  %v29 = vld [vmem:[%s1 + $0x60] sm:$0xff]
  %v30 = vld [vmem:[%s1 + $0x68] sm:$0xff]
  %v31 = vld [vmem:[%s1 + $0x70] sm:$0xff]
  %v32 = vld [vmem:[%s1 + $0x78] sm:$0xff]
  %v33 = vld [vmem:[%s1 + $0x80] sm:$0xff]
  %v34 = vld [vmem:[%s1 + $0x88] sm:$0xff]
  %v35 = vld [vmem:[%s1 + $0x90] sm:$0xff]
  %v36 = vld [vmem:[%s1 + $0x98] sm:$0xff]
  %v37 = vld [vmem:[%s1 + $0xa0] sm:$0xff]
  %v38 = vld [vmem:[%s1 + $0xa8] sm:$0xff]
  %v39 = vld [vmem:[%s1 + $0xb0] sm:$0xff]
  %v40 = vld [vmem:[%s1 + $0xb8] sm:$0xff]
  %v41 = vld [vmem:[%s1 + $0xc0] sm:$0xff]
  %v42 = vld [vmem:[%s1 + $0xc8] sm:$0xff]
  %v43 = vld [vmem:[%s1 + $0xd0] sm:$0xff]
  %v44 = vld [vmem:[%s1 + $0xd8] sm:$0xff]
  %v45 = vld [vmem:[%s1 + $0xe0] sm:$0xff]
  %v46 = vld [vmem:[%s1 + $0xe8] sm:$0xff]
  %v47 = vld [vmem:[%s1 + $0xf0] sm:$0xff]
  %v48 = vld [vmem:[%s1 + $0xf8] sm:$0xff]
  %v49 = vld [vmem:[%s1 + $0x100] sm:$0xff]
  %v50 = vld [vmem:[%s1 + $0x108] sm:$0xff]
  %v51 = vld [vmem:[%s1 + $0x110] sm:$0xff]
  %v52 = vld [vmem:[%s1 + $0x118] sm:$0xff]
  %v53 = vld [vmem:[%s1 + $0x120] sm:$0xff]
  %v54 = vld [vmem:[%s1 + $0x128] sm:$0xff]
  %v55 = vld [vmem:[%s1 + $0x130] sm:$0xff]
  %v56 = vld [vmem:[%s1 + $0x138] sm:$0xff]
  %v57 = vld [vmem:[%s1 + $0x140] sm:$0xff]
  %v58 = vld [vmem:[%s1 + $0x148] sm:$0xff]
  %v59 = vld [vmem:[%s1 + $0x150] sm:$0xff]
  %v60 = vld [vmem:[%s1 + $0x158] sm:$0xff]
  %v61 = vld [vmem:[%s1 + $0x160] sm:$0xff]
  %v62 = vld [vmem:[%s1 + $0x168] sm:$0xff]
  %v63 = vld [vmem:[%s1 + $0x170] sm:$0xff]
  %v64 = vld [vmem:[%s1 + $0x178] sm:$0xff]
  %vm65 = vcmask 359424
  %v67 = vsel %vm65, %v16, 0
  %v70 = vsel %vm65, %v19, 0
  %v73 = vsel %vm65, %v22, 0
  %v76 = vsel %vm65, %v25, 0
  %v79 = vsel %vm65, %v28, 0
  %v82 = vsel %vm65, %v31, 0
  %v85 = vsel %vm65, %v34, 0
  %v88 = vsel %vm65, %v37, 0
  %v91 = vsel %vm65, %v40, 0
  %v94 = vsel %vm65, %v43, 0
  %v97 = vsel %vm65, %v46, 0
  %v100 = vsel %vm65, %v49, 0
  %v103 = vsel %vm65, %v52, 0
  %v106 = vsel %vm65, %v55, 0
  %v109 = vsel %vm65, %v58, 0
  %v112 = vsel %vm65, %v61, 0
  %v115 = vsel %vm65, %v64, 0
  %117 = vmatprep.subr.mxu0 %v18
  %118 = vmatpush1.xpose.msra.mxu0 %v17
  %119 = vmatprep.subr.mxu0 %v21
  %120 = vmatpush1.xpose.msra.mxu0 %v20
  %121 = vmatprep.subr.mxu0 %v24
  %122 = vmatpush1.xpose.msra.mxu0 %v23
  %123 = vmatprep.subr.mxu0 %v27
  %124 = vmatpush1.xpose.msra.mxu0 %v26
  %125 = vmatprep.subr.mxu0 %v30
  %126 = vmatpush1.xpose.msra.mxu0 %v29
  %127 = vmatprep.subr.mxu0 %v33
  %128 = vmatpush1.xpose.msra.mxu0 %v32
  %129 = vmatprep.subr.mxu0 %v36
  %130 = vmatpush1.xpose.msra.mxu0 %v35
  %131 = vmatprep.subr.mxu0 %v39
  %132 = vmatpush1.xpose.msra.mxu0 %v38
  %133 = vmatprep.subr.mxu0 %v42
  %134 = vmatpush1.xpose.msra.mxu0 %v41
  %135 = vmatprep.subr.mxu0 %v45
  %136 = vmatpush1.xpose.msra.mxu0 %v44
  %137 = vmatprep.subr.mxu0 %v48
  %138 = vmatpush1.xpose.msra.mxu0 %v47
  %139 = vmatprep.subr.mxu0 %v51
  %140 = vmatpush1.xpose.msra.mxu0 %v50
  %141 = vmatprep.subr.mxu0 %v54
  %142 = vmatpush1.xpose.msra.mxu0 %v53
  %143 = vmatprep.subr.mxu0 %v57
  %144 = vmatpush1.xpose.msra.mxu0 %v56
  %145 = vmatprep.subr.mxu0 %v60
  %146 = vmatpush1.xpose.msra.mxu0 %v59
  %147 = vmatprep.subr.mxu0 %v63
  %148 = vmatpush1.xpose.msra.mxu0 %v62
  %149 = vmatprep.subr.mxu0 0.0
  %150 = vmatpush1.xpose.msra.mxu0 0.0
  %151 = vmatprep.subr.mxu0 0.0
  %152 = vmatpush1.xpose.msra.mxu0 0.0
  %153 = vmatprep.subr.mxu0 0.0
  %154 = vmatpush1.xpose.msra.mxu0 0.0
  %155 = vmatprep.subr.mxu0 0.0
  %156 = vmatpush1.xpose.msra.mxu0 0.0
  %157 = vmatprep.subr.mxu0 0.0
  %158 = vmatpush1.xpose.msra.mxu0 0.0
  %159 = vmatprep.subr.mxu0 0.0
  %160 = vmatpush1.xpose.msra.mxu0 0.0
  %161 = vmatprep.subr.mxu0 0.0
  %162 = vmatpush1.xpose.msra.mxu0 0.0
  %163 = vmatprep.subr.mxu0 0.0
  %164 = vmatpush1.xpose.msra.mxu0 0.0
  %165 = vmatprep.subr.mxu0 0.0
  %166 = vmatpush1.xpose.msra.mxu0 0.0
  %167 = vmatprep.subr.mxu0 0.0
  %168 = vmatpush1.xpose.msra.mxu0 0.0
  %169 = vmatprep.subr.mxu0 0.0
  %170 = vmatpush1.xpose.msra.mxu0 0.0
  %171 = vmatprep.subr.mxu0 0.0
  %172 = vmatpush1.xpose.msra.mxu0 0.0
  %173 = vmatprep.subr.mxu0 0.0
  %174 = vmatpush1.xpose.msra.mxu0 0.0
  %175 = vmatprep.subr.mxu0 0.0
  %176 = vmatpush1.xpose.msra.mxu0 0.0
  %177 = vmatprep.subr.mxu0 0.0
  %178 = vmatpush1.xpose.msra.mxu0 0.0
  %179 = vmatprep.subr.mxu0 0.0
  %180 = vmatpush1.xpose.msra.mxu0 0.0
  %181 = vmatprep.mubr.f32.mxu0 %v15
  %182 = vmatmul.mubr.f32.gmra.mrb[0].mxu0 %v14
  %v183 = vpop.f32.mrb[0].mxu0
  %v184 = vadd.f32 0.0, %v183
  %v185 = vpop.f32.mrb[0].mxu0
  %186 = vdwg.mxu0
  %187 = vmatprep.subr.mxu0 0.0
  %188 = vmatpush1.xpose.msra.mxu0 %v70
  %189 = vmatprep.subr.mxu0 0.0
  %190 = vmatpush1.xpose.msra.mxu0 %v73
  %191 = vmatprep.subr.mxu0 0.0
  %192 = vmatpush1.xpose.msra.mxu0 %v76
  %193 = vmatprep.subr.mxu0 0.0
  %194 = vmatpush1.xpose.msra.mxu0 %v79
  %195 = vmatprep.subr.mxu0 0.0
  %196 = vmatpush1.xpose.msra.mxu0 %v82
  %197 = vmatprep.subr.mxu0 0.0
  %198 = vmatpush1.xpose.msra.mxu0 %v85
  %199 = vmatprep.subr.mxu0 0.0
  %200 = vmatpush1.xpose.msra.mxu0 %v88
  %201 = vmatprep.subr.mxu0 0.0
  %202 = vmatpush1.xpose.msra.mxu0 %v91
  %203 = vmatprep.subr.mxu0 0.0
  %204 = vmatpush1.xpose.msra.mxu0 %v94
  %205 = vmatprep.subr.mxu0 0.0
  %206 = vmatpush1.xpose.msra.mxu0 %v97
  %207 = vmatprep.subr.mxu0 0.0
  %208 = vmatpush1.xpose.msra.mxu0 %v100
  %209 = vmatprep.subr.mxu0 0.0
  %210 = vmatpush1.xpose.msra.mxu0 %v103
  %211 = vmatprep.subr.mxu0 0.0
  %212 = vmatpush1.xpose.msra.mxu0 %v106
  %213 = vmatprep.subr.mxu0 0.0
  %214 = vmatpush1.xpose.msra.mxu0 %v109
  %215 = vmatprep.subr.mxu0 0.0
  %216 = vmatpush1.xpose.msra.mxu0 %v112
  %217 = vmatprep.subr.mxu0 0.0
  %218 = vmatpush1.xpose.msra.mxu0 %v115
  %219 = vmatprep.subr.mxu0 0.0
  %220 = vmatpush1.xpose.msra.mxu0 0.0
  %221 = vmatprep.subr.mxu0 0.0
  %222 = vmatpush1.xpose.msra.mxu0 0.0
  %223 = vmatprep.subr.mxu0 0.0
  %224 = vmatpush1.xpose.msra.mxu0 0.0
  %225 = vmatprep.subr.mxu0 0.0
  %226 = vmatpush1.xpose.msra.mxu0 0.0
  %227 = vmatprep.subr.mxu0 0.0
  %228 = vmatpush1.xpose.msra.mxu0 0.0
  %229 = vmatprep.subr.mxu0 0.0
  %230 = vmatpush1.xpose.msra.mxu0 0.0
  %231 = vmatprep.subr.mxu0 0.0
  %232 = vmatpush1.xpose.msra.mxu0 0.0
  %233 = vmatprep.subr.mxu0 0.0
  %234 = vmatpush1.xpose.msra.mxu0 0.0
  %235 = vmatprep.subr.mxu0 0.0
  %236 = vmatpush1.xpose.msra.mxu0 0.0
  %237 = vmatprep.subr.mxu0 0.0
  %238 = vmatpush1.xpose.msra.mxu0 0.0
  %239 = vmatprep.subr.mxu0 0.0
  %240 = vmatpush1.xpose.msra.mxu0 0.0
  %241 = vmatprep.subr.mxu0 0.0
  %242 = vmatpush1.xpose.msra.mxu0 0.0
  %243 = vmatprep.subr.mxu0 0.0
  %244 = vmatpush1.xpose.msra.mxu0 0.0
  %245 = vmatprep.subr.mxu0 0.0
  %246 = vmatpush1.xpose.msra.mxu0 0.0
  %247 = vmatprep.subr.mxu0 0.0
  %248 = vmatpush1.xpose.msra.mxu0 0.0
  %249 = vmatprep.subr.mxu0 0.0
  %250 = vmatpush1.xpose.msra.mxu0 0.0
  %251 = vmatprep.mubr.f32.mxu0 0.0
  %252 = vmatmul.mubr.f32.gmra.mrb[0].mxu0 %v67
  %v253 = vpop.f32.mrb[0].mxu0
  %v254 = vadd.f32 %v184, %v253
  %v255 = vpop.f32.mrb[0].mxu0
  %256 = vdwg.mxu0
  %v257 = vld [vmem:[%s2] sm:$0x1]
  %v259 = vlaneseq
  %v260 = vshrl.u32 %v259, 7
  %v261 = vsub.s32 0, %v260
  %v262 = vrot.slane %v257, %v261
  %v264 = vadd.f32 %v254, %v262
  %vm265 = vcmask 31744
  %266 = vst.msk [vmem:[%s3] sm:$0xff] %vm265, %v264
  // Predicated region
  $region14: #{tpu_custom_call.1} parent=0 // pred_check
    _
  $region15: #{tpu_custom_call.1} parent=0 // pred_check_branch
    %268 = sbr.rel (0) target = $region17
  $region16: #{tpu_custom_call.1} parent=0 // pred_region
    _
  $region17: #{tpu_custom_call.1} parent=0 // pred_fallthru
    _
  // Predicated region
  $region18: #{tpu_custom_call.1} parent=0 // pred_check
    _
  $region19: #{tpu_custom_call.1} parent=0 // pred_check_branch
    %270 = sbr.rel (0) target = $region21
  $region20: #{tpu_custom_call.1} parent=0 // pred_region
    _
  $region21: #{tpu_custom_call.1} parent=0 // pred_fallthru
    _

</llo_original>
